<compile_context>
chip_gen: v5e
topology: v5e:2x2
jax: 0.10.0
libtpu: 0.0.40
codegen_flags: <defaults>
</compile_context>

<pallas_src>
import functools

import jax
import jax.numpy as jnp
from jax import lax
from jax.experimental import pallas as pl
from jax.experimental.pallas import tpu as pltpu

EPS = 1e-5
NEG_SLOPE = 0.01
LANE = 128
VMEM_LIMIT = 32 * 1024 * 1024      # explicit scoped-VMEM budget (safe on v5e/v6e/v7x)
FUSED_MAX_BATCH = 2048             # whole-batch-in-VMEM fused path below this


# ----------------------------- shared math helpers -----------------------------

def _leaky_relu(y):
    return jnp.where(y >= 0, y, NEG_SLOPE * y)


def _bn_stats_apply(h, mean, mean_sq, gamma, beta):
    """Training-mode BatchNorm1d (given batch moments) + LeakyReLU, in f32."""
    var = jnp.maximum(mean_sq - mean * mean, 0.0)   # clamp: E[h^2]-m^2 can cancel < 0
    scale = gamma * lax.rsqrt(var + EPS)
    shift = beta - mean * scale
    return _leaky_relu(h * scale + shift)


def _bn_lrelu_batch(h, gamma, beta):
    """BN over the full batch held in VMEM (small-B fused path)."""
    inv_n = 1.0 / h.shape[0]
    mean = jnp.sum(h, axis=0, keepdims=True) * inv_n
    mean_sq = jnp.sum(h * h, axis=0, keepdims=True) * inv_n
    return _bn_stats_apply(h, mean, mean_sq, gamma, beta)


# ----------------------------- kernels -----------------------------

def _fused_kernel(x_ref, w1_ref, w2_ref, w3_ref, gb_ref, b3_ref, o_ref):
    """Whole batch in VMEM: (Linear -> BN -> LeakyReLU) x2 -> Linear(+bias)."""
    h = jnp.dot(x_ref[...].astype(w1_ref.dtype), w1_ref[...],
                preferred_element_type=jnp.float32)
    h = _bn_lrelu_batch(h, gb_ref[0:1, :], gb_ref[1:2, :])
    h = jnp.dot(h.astype(w2_ref.dtype), w2_ref[...],
                preferred_element_type=jnp.float32)
    h = _bn_lrelu_batch(h, gb_ref[2:3, :], gb_ref[3:4, :])
    o = jnp.dot(h.astype(w3_ref.dtype), w3_ref[...],
                preferred_element_type=jnp.float32) + b3_ref[...]
    o_ref[...] = o.astype(o_ref.dtype)


def _stats1_kernel(x_ref, w1_ref, s1_ref):
    """Pass 1: accumulate column sum / sum-of-squares of h1 = x @ w1."""
    h = jnp.dot(x_ref[...].astype(w1_ref.dtype), w1_ref[...],
                preferred_element_type=jnp.float32)
    tile = jnp.concatenate([jnp.sum(h, axis=0, keepdims=True),
                            jnp.sum(h * h, axis=0, keepdims=True)], axis=0)

    @pl.when(pl.program_id(0) == 0)
    def _():
        s1_ref[...] = jnp.zeros_like(s1_ref)

    s1_ref[...] += tile


def _stats2_kernel(x_ref, w1_ref, w2_ref, s1_ref, gb_ref, s2_ref, *, inv_n):
    """Pass 2: recompute h1, apply BN1+LeakyReLU, accumulate stats of h2 = a1 @ w2."""
    h1 = jnp.dot(x_ref[...].astype(w1_ref.dtype), w1_ref[...],
                 preferred_element_type=jnp.float32)
    a1 = _bn_stats_apply(h1, s1_ref[0:1, :] * inv_n, s1_ref[1:2, :] * inv_n,
                         gb_ref[0:1, :], gb_ref[1:2, :])
    h2 = jnp.dot(a1.astype(w2_ref.dtype), w2_ref[...],
                 preferred_element_type=jnp.float32)
    tile = jnp.concatenate([jnp.sum(h2, axis=0, keepdims=True),
                            jnp.sum(h2 * h2, axis=0, keepdims=True)], axis=0)

    @pl.when(pl.program_id(0) == 0)
    def _():
        s2_ref[...] = jnp.zeros_like(s2_ref)

    s2_ref[...] += tile


def _apply_kernel(x_ref, w1_ref, w2_ref, w3_ref, s1_ref, s2_ref, gb_ref, b3_ref,
                  o_ref, *, inv_n):
    """Pass 3: recompute, apply both BNs, final Linear + bias.  No cross-tile state."""
    h1 = jnp.dot(x_ref[...].astype(w1_ref.dtype), w1_ref[...],
                 preferred_element_type=jnp.float32)
    a1 = _bn_stats_apply(h1, s1_ref[0:1, :] * inv_n, s1_ref[1:2, :] * inv_n,
                         gb_ref[0:1, :], gb_ref[1:2, :])
    h2 = jnp.dot(a1.astype(w2_ref.dtype), w2_ref[...],
                 preferred_element_type=jnp.float32)
    a2 = _bn_stats_apply(h2, s2_ref[0:1, :] * inv_n, s2_ref[1:2, :] * inv_n,
                         gb_ref[2:3, :], gb_ref[3:4, :])
    o = jnp.dot(a2.astype(w3_ref.dtype), w3_ref[...],
                preferred_element_type=jnp.float32) + b3_ref[...]
    o_ref[...] = o.astype(o_ref.dtype)


# ----------------------------- one-time param prep -----------------------------

def prepare_params(params, *, compute_dtype=jnp.float32):
    """One-time packing: lane-pad width to a 128 multiple, pack BN rows, cast weights.

    gamma is padded with ZEROS so padded columns have scale=0 and stay exactly 0
    through BN / LeakyReLU / the next (zero-padded) matmul.
    """
    w1, w2, w3 = params["w1"], params["w2"], params["w3"]
    ni, width = w1.shape
    no = w3.shape[1]
    wp = ((width + LANE - 1) // LANE) * LANE
    pad = wp - width

    def pad_row(v):                         # (1, width) -> (1, wp), zero fill
        return jnp.pad(v, ((0, 0), (0, pad)))

    gb = jnp.concatenate([pad_row(params["g1"]), pad_row(params["b1"]),
                          pad_row(params["g2"]), pad_row(params["b2"])],
                         axis=0).astype(jnp.float32)          # (4, wp): g1,b1,g2,b2

    return dict(
        w1p=jnp.pad(w1, ((0, 0), (0, pad))).astype(compute_dtype),      # (ni, wp)
        w2p=jnp.pad(w2, ((0, pad), (0, pad))).astype(compute_dtype),    # (wp, wp)
        w3p=jnp.pad(w3, ((0, pad), (0, 0))).astype(compute_dtype),      # (wp, no)
        gb=gb,
        b3=params["b3"].astype(jnp.float32),                            # (1, no)
        num_inputs=ni, width=width, width_padded=wp, num_outputs=no)


# ----------------------------- wrappers -----------------------------

def _cost_estimate(flops, arrays, extra_bytes=0):
    nbytes = sum(int(a.size) * a.dtype.itemsize for a in arrays) + int(extra_bytes)
    return pl.CostEstimate(flops=int(flops), transcendentals=0, bytes_accessed=nbytes)


def _fused_forward(x, prep):
    b = x.shape[0]
    ni, wp, no = prep["num_inputs"], prep["width_padded"], prep["num_outputs"]
    args = (x, prep["w1p"], prep["w2p"], prep["w3p"], prep["gb"], prep["b3"])
    vmem = pl.BlockSpec(memory_space=pltpu.MemorySpace.VMEM)
    flops = 2 * b * (ni * wp + wp * wp + wp * no)
    return pl.pallas_call(
        _fused_kernel,
        out_shape=jax.ShapeDtypeStruct((b, no), jnp.float32),
        in_specs=[vmem] * len(args),
        out_specs=vmem,
        compiler_params=pltpu.CompilerParams(vmem_limit_bytes=VMEM_LIMIT),
        cost_estimate=_cost_estimate(flops, args, extra_bytes=b * no * 4),
    )(*args)


def _tiled_forward(x, prep, tb):
    b = x.shape[0]
    assert b % tb == 0, "batch must be divisible by the batch tile"
    ni, wp, no = prep["num_inputs"], prep["width_padded"], prep["num_outputs"]
    w1p, w2p, w3p, gb, b3 = (prep["w1p"], prep["w2p"], prep["w3p"],
                             prep["gb"], prep["b3"])
    grid = (b // tb,)
    inv_n = 1.0 / b

    x_spec = pl.BlockSpec((tb, ni), lambda i: (i, 0))
    w1_spec = pl.BlockSpec((ni, wp), lambda i: (0, 0))
    w2_spec = pl.BlockSpec((wp, wp), lambda i: (0, 0))
    w3_spec = pl.BlockSpec((wp, no), lambda i: (0, 0))
    gb_spec = pl.BlockSpec((4, wp), lambda i: (0, 0))
    b3_spec = pl.BlockSpec((1, no), lambda i: (0, 0))
    st_spec = pl.BlockSpec((2, wp), lambda i: (0, 0))
    out_spec = pl.BlockSpec((tb, no), lambda i: (i, 0))

    stats_shape = jax.ShapeDtypeStruct((2, wp), jnp.float32)
    arb = pltpu.CompilerParams(dimension_semantics=("arbitrary",),
                               vmem_limit_bytes=VMEM_LIMIT)
    par = pltpu.CompilerParams(dimension_semantics=("parallel",),
                               vmem_limit_bytes=VMEM_LIMIT)

    s1 = pl.pallas_call(
        _stats1_kernel, grid=grid,
        out_shape=stats_shape,
        in_specs=[x_spec, w1_spec],
        out_specs=st_spec,
        compiler_params=arb,
        cost_estimate=_cost_estimate(2 * b * ni * wp, (x, w1p),
                                     extra_bytes=2 * wp * 4),
    )(x, w1p)

    s2 = pl.pallas_call(
        functools.partial(_stats2_kernel, inv_n=inv_n), grid=grid,
        out_shape=stats_shape,
        in_specs=[x_spec, w1_spec, w2_spec, st_spec, gb_spec],
        out_specs=st_spec,
        compiler_params=arb,
        cost_estimate=_cost_estimate(2 * b * (ni * wp + wp * wp),
                                     (x, w1p, w2p, s1, gb),
                                     extra_bytes=2 * wp * 4),
    )(x, w1p, w2p, s1, gb)

    out = pl.pallas_call(
        functools.partial(_apply_kernel, inv_n=inv_n), grid=grid,
        out_shape=jax.ShapeDtypeStruct((b, no), jnp.float32),
        in_specs=[x_spec, w1_spec, w2_spec, w3_spec, st_spec, st_spec,
                  gb_spec, b3_spec],
        out_specs=out_spec,
        compiler_params=par,
        cost_estimate=_cost_estimate(2 * b * (ni * wp + wp * wp + wp * no),
                                     (x, w1p, w2p, w3p, s1, s2, gb, b3),
                                     extra_bytes=b * no * 4),
    )(x, w1p, w2p, w3p, s1, s2, gb, b3)
    return out


def _pick_batch_tile(b):
    if b <= FUSED_MAX_BATCH:
        return None
    for tb in (2048, 1024, 512, 256, 128):
        if b % tb == 0:
            return tb
    # TODO(synk): mask a ragged final tile in the stats passes; for now fall back
    # to the fused whole-batch path (correct, but VMEM scales with B).
    return None


def mlp_forward(x, prep, *, batch_tile=None):
    """x: [B, num_inputs] f32.  prep: output of prepare_params."""
    if batch_tile is None:
        batch_tile = _pick_batch_tile(x.shape[0])
    if batch_tile is None or batch_tile >= x.shape[0]:
        return _fused_forward(x, prep)
    return _tiled_forward(x, prep, batch_tile)


# ----------------------------- init / reference -----------------------------

def init_params(key, num_inputs=1, width=32, num_outputs=1):
    """Synthetic params with the shapes nn.MLP implies (weights stored [in, out])."""
    k1, k2, k3, k4 = jax.random.split(key, 4)
    w1 = (jax.random.normal(k1, (num_inputs, width), jnp.float32)
          / jnp.sqrt(jnp.float32(num_inputs)))
    w2 = (jax.random.normal(k2, (width, width), jnp.float32)
          / jnp.sqrt(jnp.float32(width)))
    w3 = (jax.random.normal(k3, (width, num_outputs), jnp.float32)
          / jnp.sqrt(jnp.float32(width)))
    b3 = 0.01 * jax.random.normal(k4, (1, num_outputs), jnp.float32)
    g1 = jnp.ones((1, width), jnp.float32)
    b1 = jnp.zeros((1, width), jnp.float32)
    g2 = jnp.ones((1, width), jnp.float32)
    b2 = jnp.zeros((1, width), jnp.float32)
    return dict(w1=w1, g1=g1, b1=b1, w2=w2, g2=g2, b2=b2, w3=w3, b3=b3)


def mlp_reference(x, p):
    """Pure-JAX reference (matches PyTorch training-mode forward)."""
    h = x @ p["w1"]
    m = h.mean(0, keepdims=True)
    v = ((h - m) ** 2).mean(0, keepdims=True)
    h = (h - m) / jnp.sqrt(v + EPS) * p["g1"] + p["b1"]
    h = jnp.where(h >= 0, h, NEG_SLOPE * h)
    h = h @ p["w2"]
    m = h.mean(0, keepdims=True)
    v = ((h - m) ** 2).mean(0, keepdims=True)
    h = (h - m) / jnp.sqrt(v + EPS) * p["g2"] + p["b2"]
    h = jnp.where(h >= 0, h, NEG_SLOPE * h)
    return h @ p["w3"] + p["b3"]


if __name__ == "__main__":
    key = jax.random.PRNGKey(0)
    kx, kp, kx2 = jax.random.split(key, 3)

    B, num_inputs, width, num_outputs = 16, 4, 32, 4
    x = jax.random.normal(kx, (B, num_inputs), jnp.float32)
    params = init_params(kp, num_inputs=num_inputs, width=width,
                         num_outputs=num_outputs)
    ref = mlp_reference(x, params)

    # f32 fused path (small batch).
    prep_f32 = prepare_params(params)
    out = mlp_forward(x, prep_f32)
    jax.block_until_ready(out)
    assert out.shape == (B, num_outputs)
    assert jnp.allclose(out, ref, atol=1e-4, rtol=1e-4), "f32 fused mismatch"

    # bf16 weight path (x stays f32 in HBM; cast happens inside the kernel).
    # NOTE: activations are bf16 between layers -> intentional precision loss.
    prep_bf16 = prepare_params(params, compute_dtype=jnp.bfloat16)
    out_bf16 = mlp_forward(x, prep_bf16)
    jax.block_until_ready(out_bf16)
    assert out_bf16.shape == (B, num_outputs)
    assert bool(jnp.isfinite(out_bf16).all())
    assert jnp.allclose(out_bf16, ref, atol=0.3, rtol=0.1), "bf16 path diverged"

    # Batch-tiled three-pass path (forced small tile so the test stays small).
    B2 = 1024
    x2 = jax.random.normal(kx2, (B2, num_inputs), jnp.float32)
    ref2 = mlp_reference(x2, params)
    out2 = mlp_forward(x2, prep_f32, batch_tile=256)
    jax.block_until_ready(out2)
    assert out2.shape == (B2, num_outputs)
    assert jnp.allclose(out2, ref2, atol=2e-3, rtol=2e-3), "tiled path mismatch"

    print("KERNEL_OK")
</pallas_src>

<mosaic_0001>
module attributes {stable_mosaic.version = 11 : i64} {
  func.func @_fused_kernel(%arg0: memref<16x4xf32, #tpu.memory_space<vmem>>, %arg1: memref<4x128xf32, #tpu.memory_space<vmem>>, %arg2: memref<128x128xf32, #tpu.memory_space<vmem>>, %arg3: memref<128x4xf32, #tpu.memory_space<vmem>>, %arg4: memref<4x128xf32, #tpu.memory_space<vmem>>, %arg5: memref<1x4xf32, #tpu.memory_space<vmem>>, %arg6: memref<16x4xf32, #tpu.memory_space<vmem>>) attributes {dimension_semantics = [], scalar_prefetch = 0 : i64, scratch_operands = 0 : i64, tpu.core_type = #tpu.core_type<tc>} {
    %c0 = arith.constant 0 : index
    %c0_0 = arith.constant 0 : index
    %0 = vector.load %arg0[%c0, %c0_0] : memref<16x4xf32, #tpu.memory_space<vmem>>, vector<16x4xf32>
    %c0_1 = arith.constant 0 : index
    %c0_2 = arith.constant 0 : index
    %1 = vector.load %arg1[%c0_1, %c0_2] : memref<4x128xf32, #tpu.memory_space<vmem>>, vector<4x128xf32>
    %cst = arith.constant dense<0.000000e+00> : vector<16x128xf32>
    %2 = tpu.matmul %0, %1, %cst {dimension_numbers = #tpu.dot_dimension_numbers<[1], [0], [0], [1], [0, 0, 1, 1], [], []>} : vector<16x4xf32>, vector<4x128xf32>, vector<16x128xf32> -> vector<16x128xf32>
    %c0_3 = arith.constant 0 : index
    %c0_4 = arith.constant 0 : index
    %3 = vector.load %arg4[%c0_3, %c0_4] : memref<4x128xf32, #tpu.memory_space<vmem>>, vector<1x128xf32>
    %c1 = arith.constant 1 : index
    %c0_5 = arith.constant 0 : index
    %4 = vector.load %arg4[%c1, %c0_5] : memref<4x128xf32, #tpu.memory_space<vmem>>, vector<1x128xf32>
    %cst_6 = arith.constant dense<0.000000e+00> : vector<128xf32>
    %5 = vector.multi_reduction <add>, %2, %cst_6 [0] : vector<16x128xf32> to vector<128xf32>
    %6 = vector.shape_cast %5 : vector<128xf32> to vector<1x128xf32>
    %cst_7 = arith.constant 6.250000e-02 : f32
    %7 = vector.broadcast %cst_7 : f32 to vector<1x128xf32>
    %8 = arith.mulf %6, %7 : vector<1x128xf32>
    %9 = arith.mulf %2, %2 : vector<16x128xf32>
    %cst_8 = arith.constant dense<0.000000e+00> : vector<128xf32>
    %10 = vector.multi_reduction <add>, %9, %cst_8 [0] : vector<16x128xf32> to vector<128xf32>
    %11 = vector.shape_cast %10 : vector<128xf32> to vector<1x128xf32>
    %cst_9 = arith.constant 6.250000e-02 : f32
    %12 = vector.broadcast %cst_9 : f32 to vector<1x128xf32>
    %13 = arith.mulf %11, %12 : vector<1x128xf32>
    %14 = arith.mulf %8, %8 : vector<1x128xf32>
    %15 = arith.subf %13, %14 : vector<1x128xf32>
    %cst_10 = arith.constant 0.000000e+00 : f32
    %16 = vector.broadcast %cst_10 : f32 to vector<1x128xf32>
    %17 = arith.maximumf %15, %16 : vector<1x128xf32>
    %cst_11 = arith.constant 9.99999974E-6 : f32
    %18 = vector.broadcast %cst_11 : f32 to vector<1x128xf32>
    %19 = arith.addf %17, %18 : vector<1x128xf32>
    %20 = math.rsqrt %19 : vector<1x128xf32>
    %21 = arith.mulf %3, %20 : vector<1x128xf32>
    %22 = arith.mulf %8, %21 : vector<1x128xf32>
    %23 = arith.subf %4, %22 : vector<1x128xf32>
    %24 = vector.broadcast %21 : vector<1x128xf32> to vector<16x128xf32>
    %25 = arith.mulf %2, %24 : vector<16x128xf32>
    %26 = vector.broadcast %23 : vector<1x128xf32> to vector<16x128xf32>
    %27 = arith.addf %25, %26 : vector<16x128xf32>
    %cst_12 = arith.constant 0.000000e+00 : f32
    %28 = vector.broadcast %cst_12 : f32 to vector<16x128xf32>
    %29 = arith.cmpf oge, %27, %28 : vector<16x128xf32>
    %cst_13 = arith.constant 0.00999999977 : f32
    %30 = vector.broadcast %cst_13 : f32 to vector<16x128xf32>
    %31 = arith.mulf %30, %27 : vector<16x128xf32>
    %32 = arith.select %29, %27, %31 : vector<16x128xi1>, vector<16x128xf32>
    %c0_14 = arith.constant 0 : index
    %c0_15 = arith.constant 0 : index
    %33 = vector.load %arg2[%c0_14, %c0_15] : memref<128x128xf32, #tpu.memory_space<vmem>>, vector<128x128xf32>
    %cst_16 = arith.constant dense<0.000000e+00> : vector<16x128xf32>
    %34 = tpu.matmul %32, %33, %cst_16 {dimension_numbers = #tpu.dot_dimension_numbers<[1], [0], [0], [1], [0, 0, 1, 1], [], []>} : vector<16x128xf32>, vector<128x128xf32>, vector<16x128xf32> -> vector<16x128xf32>
    %c2 = arith.constant 2 : index
    %c0_17 = arith.constant 0 : index
    %35 = vector.load %arg4[%c2, %c0_17] : memref<4x128xf32, #tpu.memory_space<vmem>>, vector<1x128xf32>
    %c3 = arith.constant 3 : index
    %c0_18 = arith.constant 0 : index
    %36 = vector.load %arg4[%c3, %c0_18] : memref<4x128xf32, #tpu.memory_space<vmem>>, vector<1x128xf32>
    %cst_19 = arith.constant dense<0.000000e+00> : vector<128xf32>
    %37 = vector.multi_reduction <add>, %34, %cst_19 [0] : vector<16x128xf32> to vector<128xf32>
    %38 = vector.shape_cast %37 : vector<128xf32> to vector<1x128xf32>
    %cst_20 = arith.constant 6.250000e-02 : f32
    %39 = vector.broadcast %cst_20 : f32 to vector<1x128xf32>
    %40 = arith.mulf %38, %39 : vector<1x128xf32>
    %41 = arith.mulf %34, %34 : vector<16x128xf32>
    %cst_21 = arith.constant dense<0.000000e+00> : vector<128xf32>
    %42 = vector.multi_reduction <add>, %41, %cst_21 [0] : vector<16x128xf32> to vector<128xf32>
    %43 = vector.shape_cast %42 : vector<128xf32> to vector<1x128xf32>
    %cst_22 = arith.constant 6.250000e-02 : f32
    %44 = vector.broadcast %cst_22 : f32 to vector<1x128xf32>
    %45 = arith.mulf %43, %44 : vector<1x128xf32>
    %46 = arith.mulf %40, %40 : vector<1x128xf32>
    %47 = arith.subf %45, %46 : vector<1x128xf32>
    %cst_23 = arith.constant 0.000000e+00 : f32
    %48 = vector.broadcast %cst_23 : f32 to vector<1x128xf32>
    %49 = arith.maximumf %47, %48 : vector<1x128xf32>
    %cst_24 = arith.constant 9.99999974E-6 : f32
    %50 = vector.broadcast %cst_24 : f32 to vector<1x128xf32>
    %51 = arith.addf %49, %50 : vector<1x128xf32>
    %52 = math.rsqrt %51 : vector<1x128xf32>
    %53 = arith.mulf %35, %52 : vector<1x128xf32>
    %54 = arith.mulf %40, %53 : vector<1x128xf32>
    %55 = arith.subf %36, %54 : vector<1x128xf32>
    %56 = vector.broadcast %53 : vector<1x128xf32> to vector<16x128xf32>
    %57 = arith.mulf %34, %56 : vector<16x128xf32>
    %58 = vector.broadcast %55 : vector<1x128xf32> to vector<16x128xf32>
    %59 = arith.addf %57, %58 : vector<16x128xf32>
    %cst_25 = arith.constant 0.000000e+00 : f32
    %60 = vector.broadcast %cst_25 : f32 to vector<16x128xf32>
    %61 = arith.cmpf oge, %59, %60 : vector<16x128xf32>
    %cst_26 = arith.constant 0.00999999977 : f32
    %62 = vector.broadcast %cst_26 : f32 to vector<16x128xf32>
    %63 = arith.mulf %62, %59 : vector<16x128xf32>
    %64 = arith.select %61, %59, %63 : vector<16x128xi1>, vector<16x128xf32>
    %c0_27 = arith.constant 0 : index
    %c0_28 = arith.constant 0 : index
    %65 = vector.load %arg3[%c0_27, %c0_28] : memref<128x4xf32, #tpu.memory_space<vmem>>, vector<128x4xf32>
    %cst_29 = arith.constant dense<0.000000e+00> : vector<16x4xf32>
    %66 = tpu.matmul %64, %65, %cst_29 {dimension_numbers = #tpu.dot_dimension_numbers<[1], [0], [0], [1], [0, 0, 1, 1], [], []>} : vector<16x128xf32>, vector<128x4xf32>, vector<16x4xf32> -> vector<16x4xf32>
    %c0_30 = arith.constant 0 : index
    %c0_31 = arith.constant 0 : index
    %67 = vector.load %arg5[%c0_30, %c0_31] : memref<1x4xf32, #tpu.memory_space<vmem>>, vector<1x4xf32>
    %68 = vector.broadcast %67 : vector<1x4xf32> to vector<16x4xf32>
    %69 = arith.addf %66, %68 : vector<16x4xf32>
    %c0_32 = arith.constant 0 : index
    %c0_33 = arith.constant 0 : index
    %70 = vector.load %arg6[%c0_32, %c0_33] : memref<16x4xf32, #tpu.memory_space<vmem>>, vector<16x4xf32>
    tpu.vector_store %arg6[%c0_32, %c0_33], %69 {strides = array<i32>} : memref<16x4xf32, #tpu.memory_space<vmem>>, vector<16x4xf32>,
    return
  }
}

</mosaic_0001>

<llo_original>
// kernel: tpu_custom_call.1
$region0: #{tpu_custom_call.1}
  #allocation0 [shape = 'u32[]', space=smem, size = 0x4, offset = 0x4, fixed_abs, tag = 'smem constant byte address 0x4 - core index']
  #allocation1 [shape = 'u32[72,128]{1,0:T(1,128)}', space=vmem, size = 0x9000, scoped, tag = 'internal scratch']
  %s0 = inlined_call_operand.vmem [shape: f32[16,4], index: 0, kind: input, shape index: {}]
  %s1 = inlined_call_operand.vmem [shape: f32[4,128], index: 1, kind: input, shape index: {}]
  %s2 = inlined_call_operand.vmem [shape: f32[128,128], index: 2, kind: input, shape index: {}]
  %s3 = inlined_call_operand.vmem [shape: f32[128,4], index: 3, kind: input, shape index: {}]
  %s4 = inlined_call_operand.vmem [shape: f32[4,128], index: 4, kind: input, shape index: {}]
  %s5 = inlined_call_operand.vmem [shape: f32[1,4], index: 5, kind: input, shape index: {}]
  %s6 = inlined_call_operand.vmem [shape: f32[16,4], index: 6, kind: output, shape index: {}]
  %s7 = sld [smem:[#allocation0]]
  $region34: #{tpu_custom_call.1} parent=0
    _
  %s9 = ssub.s32 1, %s7
  %s10 = scalar_select 0, %s9, %s7
  // Predicated region
  $region2: #{tpu_custom_call.1} parent=0 // pred_check
    _
  $region3: #{tpu_custom_call.1} parent=0 // pred_check_branch
    %12 = sbr.rel (0) target = $region5
  $region4: #{tpu_custom_call.1} parent=0 // pred_region
    _
  $region5: #{tpu_custom_call.1} parent=0 // pred_fallthru
    _
  // Predicated region
  $region6: #{tpu_custom_call.1} parent=0 // pred_check
    _
  $region7: #{tpu_custom_call.1} parent=0 // pred_check_branch
    %14 = sbr.rel (0) target = $region9
  $region8: #{tpu_custom_call.1} parent=0 // pred_region
    _
  $region9: #{tpu_custom_call.1} parent=0 // pred_fallthru
    _
  // Predicated region
  $region10: #{tpu_custom_call.1} parent=0 // pred_check
    _
  $region11: #{tpu_custom_call.1} parent=0 // pred_check_branch
    %16 = sbr.rel (0) target = $region13
  $region12: #{tpu_custom_call.1} parent=0 // pred_region
    _
  $region13: #{tpu_custom_call.1} parent=0 // pred_fallthru
    _
  // Predicated region
  $region14: #{tpu_custom_call.1} parent=0 // pred_check
    _
  $region15: #{tpu_custom_call.1} parent=0 // pred_check_branch
    %18 = sbr.rel (0) target = $region17
  $region16: #{tpu_custom_call.1} parent=0 // pred_region
    _
  $region17: #{tpu_custom_call.1} parent=0 // pred_fallthru
    _
  // Predicated region
  $region18: #{tpu_custom_call.1} parent=0 // pred_check
    _
  $region19: #{tpu_custom_call.1} parent=0 // pred_check_branch
    %20 = sbr.rel (0) target = $region21
  $region20: #{tpu_custom_call.1} parent=0 // pred_region
    _
  $region21: #{tpu_custom_call.1} parent=0 // pred_fallthru
    _
  // Predicated region
  $region22: #{tpu_custom_call.1} parent=0 // pred_check
    _
  $region23: #{tpu_custom_call.1} parent=0 // pred_check_branch
    %22 = sbr.rel (0) target = $region25
  $region24: #{tpu_custom_call.1} parent=0 // pred_region
    _
  $region25: #{tpu_custom_call.1} parent=0 // pred_fallthru
    _
  %v23 = vld [vmem:[%s0] sm:$0xff]
  %v24 = vld [vmem:[%s0 + $0x8] sm:$0xff]
  %v25 = vld [vmem:[%s1] sm:$0xf]
  %vm26 = vcmask 31744
  %v28 = vsel %vm26, %v23, 0
  %v31 = vsel %vm26, %v24, 0
  %vm33 = vcmask 1043456
  %v35 = vsel %vm33, %v25, 0
  %37 = vmatpush.msra.mxu0 0.0
  %38 = vmatpush.msra.mxu0 0.0
  %39 = vmatpush.msra.mxu0 0.0
  %40 = vmatpush.msra.mxu0 0.0
  %41 = vmatpush.msra.mxu0 0.0
  %42 = vmatpush.msra.mxu0 0.0
  %43 = vmatpush.msra.mxu0 0.0
  %44 = vmatpush.msra.mxu0 0.0
  %45 = vmatpush.msra.mxu0 0.0
  %46 = vmatpush.msra.mxu0 0.0
  %47 = vmatpush.msra.mxu0 0.0
  %48 = vmatpush.msra.mxu0 0.0
  %49 = vmatpush.msra.mxu0 0.0
  %50 = vmatpush.msra.mxu0 0.0
  %51 = vmatpush.msra.mxu0 0.0
  %52 = vmatpush.msra.mxu0 %v35
  %53 = vmatmul.f32.gmra.mxu0 %v28
  %v54 = vpop.f32.mrf.mxu0
  %v55 = vadd.f32 0.0, %v54
  %56 = vmatmul.f32.gmra.mxu0 %v31
  %v57 = vpop.f32.mrf.mxu0
  %v58 = vadd.f32 0.0, %v57
  %59 = vdwg.mxu0
  %v60 = vld [vmem:[%s4] sm:$0x1]
  %v61 = vld [vmem:[%s4 + $0x1] sm:$0x1]
  %v62 = vadd.f32 %v55, %v58
  %v63 = vrot.slane %v62, 4
  %v64 = vadd.f32 %v62, %v63
  %v65 = vrot.slane %v64, 2
  %v66 = vadd.f32 %v64, %v65
  %v67 = vrot.slane %v66, 1
  %v68 = vadd.f32 %v66, %v67
  %v69 = vmul.f32 %v68, 0.0625
  %v70 = vmul.f32 %v55, %v55
  %v71 = vmul.f32 %v58, %v58
  %v72 = vadd.f32 %v70, %v71
  %v73 = vrot.slane %v72, 4
  %v74 = vadd.f32 %v72, %v73
  %v75 = vrot.slane %v74, 2
  %v76 = vadd.f32 %v74, %v75
  %v77 = vrot.slane %v76, 1
  %v78 = vadd.f32 %v76, %v77
  %v79 = vmul.f32 %v78, 0.0625
  %v80 = vmul.f32 %v69, %v69
  %v81 = vsub.f32 %v79, %v80
  %v82 = vmax.f32 %v81, 0.0
  %v83 = vadd.f32 %v82, 1e-05
  %v84 = vrsqrt.pop %v83
  %v85 = vmul.f32 %v84, %v83
  %v86 = vmul.f32 %v85, %v84
  %v87 = vmul.f32 0.5, %v86
  %v88 = vsub.f32 1.5, %v87
  %v89 = vmul.f32 %v84, %v88
  %vm90 = vweird.f32 %v83
  %vm91 = vweird.f32 %v84
  %vm92 = vmor %vm90, %vm91
  %v93 = vsel %vm92, %v84, %v89
  %v94 = vmul.f32 %v60, %v93
  %v95 = vmul.f32 %v69, %v94
  %v96 = vsub.f32 %v61, %v95
  %v97 = vperm.slane %v94, 0
  %v98 = vmul.f32 %v55, %v97
  %v99 = vmul.f32 %v58, %v97
  %v100 = vperm.slane %v96, 0
  %v101 = vadd.f32 %v98, %v100
  %v102 = vadd.f32 %v99, %v100
  %vm103 = vcmp.ge.f32.partialorder %v101, 0.0
  %vm104 = vcmp.ge.f32.partialorder %v102, 0.0
  %v105 = vmul.f32 %v101, 0.01
  %v106 = vmul.f32 %v102, 0.01
  %v107 = vsel %vm103, %v101, %v105
  %v108 = vsel %vm104, %v102, %v106
  %v109 = vld [vmem:[%s2] sm:$0xff]
  %v110 = vld [vmem:[%s2 + $0x8] sm:$0xff]
  %v111 = vld [vmem:[%s2 + $0x10] sm:$0xff]
  %v112 = vld [vmem:[%s2 + $0x18] sm:$0xff]
  %v113 = vld [vmem:[%s2 + $0x20] sm:$0xff]
  %v114 = vld [vmem:[%s2 + $0x28] sm:$0xff]
  %v115 = vld [vmem:[%s2 + $0x30] sm:$0xff]
  %v116 = vld [vmem:[%s2 + $0x38] sm:$0xff]
  %v117 = vld [vmem:[%s2 + $0x40] sm:$0xff]
  %v118 = vld [vmem:[%s2 + $0x48] sm:$0xff]
  %v119 = vld [vmem:[%s2 + $0x50] sm:$0xff]
  %v120 = vld [vmem:[%s2 + $0x58] sm:$0xff]
  %v121 = vld [vmem:[%s2 + $0x60] sm:$0xff]
  %v122 = vld [vmem:[%s2 + $0x68] sm:$0xff]
  %v123 = vld [vmem:[%s2 + $0x70] sm:$0xff]
  %v124 = vld [vmem:[%s2 + $0x78] sm:$0xff]
  %125 = vmatpush.msra.mxu0 %v124
  %126 = vmatpush.msra.mxu0 %v123
  %127 = vmatpush.msra.mxu0 %v122
  %128 = vmatpush.msra.mxu0 %v121
  %129 = vmatpush.msra.mxu0 %v120
  %130 = vmatpush.msra.mxu0 %v119
  %131 = vmatpush.msra.mxu0 %v118
  %132 = vmatpush.msra.mxu0 %v117
  %133 = vmatpush.msra.mxu0 %v116
  %134 = vmatpush.msra.mxu0 %v115
  %135 = vmatpush.msra.mxu0 %v114
  %136 = vmatpush.msra.mxu0 %v113
  %137 = vmatpush.msra.mxu0 %v112
  %138 = vmatpush.msra.mxu0 %v111
  %139 = vmatpush.msra.mxu0 %v110
  %140 = vmatpush.msra.mxu0 %v109
  %141 = vmatmul.f32.gmra.mxu0 %v107
  %v142 = vpop.f32.mrf.mxu0
  %v143 = vadd.f32 0.0, %v142
  %144 = vmatmul.f32.gmra.mxu0 %v108
  %v145 = vpop.f32.mrf.mxu0
  %v146 = vadd.f32 0.0, %v145
  %147 = vdwg.mxu0
  %v148 = vld [vmem:[%s4 + $0x2] sm:$0x1]
  %v149 = vld [vmem:[%s4 + $0x3] sm:$0x1]
  %v150 = vadd.f32 %v143, %v146
  %v151 = vrot.slane %v150, 4
  %v152 = vadd.f32 %v150, %v151
  %v153 = vrot.slane %v152, 2
  %v154 = vadd.f32 %v152, %v153
  %v155 = vrot.slane %v154, 1
  %v156 = vadd.f32 %v154, %v155
  %v157 = vmul.f32 %v156, 0.0625
  %v158 = vmul.f32 %v143, %v143
  %v159 = vmul.f32 %v146, %v146
  %v160 = vadd.f32 %v158, %v159
  %v161 = vrot.slane %v160, 4
  %v162 = vadd.f32 %v160, %v161
  %v163 = vrot.slane %v162, 2
  %v164 = vadd.f32 %v162, %v163
  %v165 = vrot.slane %v164, 1
  %v166 = vadd.f32 %v164, %v165
  %v167 = vmul.f32 %v166, 0.0625
  %v168 = vmul.f32 %v157, %v157
  %v169 = vsub.f32 %v167, %v168
  %v170 = vmax.f32 %v169, 0.0
  %v171 = vadd.f32 %v170, 1e-05
  %v172 = vrsqrt.pop %v171
  %v173 = vmul.f32 %v172, %v171
  %v174 = vmul.f32 %v173, %v172
  %v175 = vmul.f32 0.5, %v174
  %v176 = vsub.f32 1.5, %v175
  %v177 = vmul.f32 %v172, %v176
  %vm178 = vweird.f32 %v171
  %vm179 = vweird.f32 %v172
  %vm180 = vmor %vm178, %vm179
  %v181 = vsel %vm180, %v172, %v177
  %v182 = vmul.f32 %v148, %v181
  %v183 = vmul.f32 %v157, %v182
  %v184 = vsub.f32 %v149, %v183
  %v185 = vperm.slane %v182, 0
  %v186 = vmul.f32 %v143, %v185
  %v187 = vmul.f32 %v146, %v185
  %v188 = vperm.slane %v184, 0
  %v189 = vadd.f32 %v186, %v188
  %v190 = vadd.f32 %v187, %v188
  %vm191 = vcmp.ge.f32.partialorder %v189, 0.0
  %vm192 = vcmp.ge.f32.partialorder %v190, 0.0
  %v193 = vmul.f32 %v189, 0.01
  %v194 = vmul.f32 %v190, 0.01
  %v195 = vsel %vm191, %v189, %v193
  %v196 = vsel %vm192, %v190, %v194
  %v197 = vld [vmem:[%s3] sm:$0xff]
  %v198 = vld [vmem:[%s3 + $0x8] sm:$0xff]
  %v199 = vld [vmem:[%s3 + $0x10] sm:$0xff]
  %v200 = vld [vmem:[%s3 + $0x18] sm:$0xff]
  %v201 = vld [vmem:[%s3 + $0x20] sm:$0xff]
  %v202 = vld [vmem:[%s3 + $0x28] sm:$0xff]
  %v203 = vld [vmem:[%s3 + $0x30] sm:$0xff]
  %v204 = vld [vmem:[%s3 + $0x38] sm:$0xff]
  %v205 = vld [vmem:[%s3 + $0x40] sm:$0xff]
  %v206 = vld [vmem:[%s3 + $0x48] sm:$0xff]
  %v207 = vld [vmem:[%s3 + $0x50] sm:$0xff]
  %v208 = vld [vmem:[%s3 + $0x58] sm:$0xff]
  %v209 = vld [vmem:[%s3 + $0x60] sm:$0xff]
  %v210 = vld [vmem:[%s3 + $0x68] sm:$0xff]
  %v211 = vld [vmem:[%s3 + $0x70] sm:$0xff]
  %v212 = vld [vmem:[%s3 + $0x78] sm:$0xff]
  %v213 = vld [vmem:[%s5] sm:$0x1]
  %v215 = vperm.slane %v213, 0
  %217 = vmatpush.msra.mxu0 %v212
  %218 = vmatpush.msra.mxu0 %v211
  %219 = vmatpush.msra.mxu0 %v210
  %220 = vmatpush.msra.mxu0 %v209
  %221 = vmatpush.msra.mxu0 %v208
  %222 = vmatpush.msra.mxu0 %v207
  %223 = vmatpush.msra.mxu0 %v206
  %224 = vmatpush.msra.mxu0 %v205
  %225 = vmatpush.msra.mxu0 %v204
  %226 = vmatpush.msra.mxu0 %v203
  %227 = vmatpush.msra.mxu0 %v202
  %228 = vmatpush.msra.mxu0 %v201
  %229 = vmatpush.msra.mxu0 %v200
  %230 = vmatpush.msra.mxu0 %v199
  %231 = vmatpush.msra.mxu0 %v198
  %232 = vmatpush.msra.mxu0 %v197
  %233 = vmatmul.f32.gmra.mxu0 %v195
  %v234 = vpop.f32.mrf.mxu0
  %v235 = vadd.f32 %v215, %v234
  %236 = vmatmul.f32.gmra.mxu0 %v196
  %v237 = vpop.f32.mrf.mxu0
  %v238 = vadd.f32 %v215, %v237
  %239 = vdwg.mxu0
  %240 = vst.msk [vmem:[%s6] sm:$0xff] %vm26, %v235
  %241 = vst.msk [vmem:[%s6 + $0x8] sm:$0xff] %vm26, %v238
  // Predicated region
  $region26: #{tpu_custom_call.1} parent=0 // pred_check
    _
  $region27: #{tpu_custom_call.1} parent=0 // pred_check_branch
    %243 = sbr.rel (0) target = $region29
  $region28: #{tpu_custom_call.1} parent=0 // pred_region
    _
  $region29: #{tpu_custom_call.1} parent=0 // pred_fallthru
    _
  // Predicated region
  $region30: #{tpu_custom_call.1} parent=0 // pred_check
    _
  $region31: #{tpu_custom_call.1} parent=0 // pred_check_branch
    %245 = sbr.rel (0) target = $region33
  $region32: #{tpu_custom_call.1} parent=0 // pred_region
    _
  $region33: #{tpu_custom_call.1} parent=0 // pred_fallthru
    _

</llo_original>
